<compile_context>
chip_gen: v6e
topology: v6e:2x2x1
jax: 0.10.0
libtpu: 0.0.40
codegen_flags: <defaults>
</compile_context>

<pallas_src>
from functools import partial

import jax
import jax.numpy as jnp
from jax.experimental import pallas as pl
from jax.experimental.pallas import tpu as pltpu

_LANES = 128
_MAX_TILE_ROWS = 2048          # 2048x128 f32 tile = 1 MiB; double-buffered in/out
                               # (f32 in + i32 out + i16 out) ~ 5 MiB, safe even
                               # under v7x's smaller VMEM with default limits.
_INT16_MIN = -32768
_INT16_MAX = 32767


def _tensor_to_wav_kernel(x_ref, serialized_ref, frames_ref, ok_ref):
    """Truncating cast, fused int16 frames, and int16-range validity flag."""
    x = x_ref[...]                                   # (tile_rows, 128) f32
    # PyTorch .int() truncates toward zero; f32->i32 convert on TPU already
    # truncates toward zero, so no floor/ceil/select is needed.
    ivals = x.astype(jnp.int32)
    serialized_ref[...] = ivals
    frames_ref[...] = ivals.astype(jnp.int16)        # the 'h' PCM frames

    # struct.pack('h', v) requires -32768 <= v <= 32767 (and a sane finite
    # input); reduce over sublanes to a per-lane ok vector for this tile.
    in_range = (ivals >= _INT16_MIN) & (ivals <= _INT16_MAX) & jnp.isfinite(x)
    tile_ok = jnp.all(in_range, axis=0, keepdims=True)          # (1, 128) bool
    ok_ref[...] = jnp.broadcast_to(tile_ok, ok_ref.shape).astype(jnp.int32)


@partial(jax.jit, static_argnames=("max_tile_rows",))
def tensor_to_wav(tensor, max_tile_rows=_MAX_TILE_ROWS):
    """Pallas equivalent of tensorToWAVLayer.forward (minus file writing).

    Args:
      tensor: 1-D float32 waveform.

    Returns:
      serialized: int32 array, == tensor.int() in PyTorch.
      frames:     int16 array, the PCM frames struct.pack('h') would emit.
      success:    jnp bool scalar, True iff every sample is finite and fits in
                  signed 16-bit range (i.e. the WAV write would not raise).
    """
    n = tensor.shape[0]
    x = tensor.astype(jnp.float32)

    # Lay the waveform out as (rows, 128) so the last dim maps to TPU lanes.
    rows = pl.cdiv(n, _LANES)
    # Tile rows: as large as allowed, rounded up to a multiple of 16 so the
    # int16 output tiles are sublane-aligned (16 int16 sublanes per vreg).
    tile_rows = min(rows, max_tile_rows)
    tile_rows = ((tile_rows + 15) // 16) * 16
    rows_padded = ((rows + tile_rows - 1) // tile_rows) * tile_rows
    num_tiles = rows_padded // tile_rows

    # Zero padding: 0 is inside int16 range, so it never flips `success`.
    pad = rows_padded * _LANES - n
    x2 = jnp.pad(x, (0, pad)).reshape(rows_padded, _LANES)

    total = rows_padded * _LANES
    serialized2, frames2, ok = pl.pallas_call(
        _tensor_to_wav_kernel,
        out_shape=(
            jax.ShapeDtypeStruct((rows_padded, _LANES), jnp.int32),
            jax.ShapeDtypeStruct((rows_padded, _LANES), jnp.int16),
            jax.ShapeDtypeStruct((num_tiles * 8, _LANES), jnp.int32),
        ),
        grid=(num_tiles,),
        in_specs=[pl.BlockSpec((tile_rows, _LANES), lambda i: (i, 0))],
        out_specs=(
            pl.BlockSpec((tile_rows, _LANES), lambda i: (i, 0)),
            pl.BlockSpec((tile_rows, _LANES), lambda i: (i, 0)),
            pl.BlockSpec((8, _LANES), lambda i: (i, 0)),   # per-tile ok block
        ),
        compiler_params=pltpu.CompilerParams(
            dimension_semantics=("parallel",),            # megacore-friendly
        ),
        cost_estimate=pl.CostEstimate(
            flops=total,
            transcendentals=0,
            bytes_accessed=total * (4 + 4 + 2),           # f32 in, i32 + i16 out
        ),
    )(x2)

    serialized = serialized2.reshape(-1)[:n]
    frames = frames2.reshape(-1)[:n]
    success = jnp.all(ok == 1)          # stays on device; no host sync here
    return serialized, frames, success


if __name__ == "__main__":
    key = jax.random.PRNGKey(0)
    # Synthetic mono waveform: 2048 samples scaled to sit inside int16 range.
    n_samples = 2048
    waveform = jax.random.normal(key, (n_samples,), dtype=jnp.float32) * 3000.0

    serialized, frames, success = tensor_to_wav(waveform)
    jax.block_until_ready(serialized)
    jax.block_until_ready(frames)
    jax.block_until_ready(success)

    # Sanity checks against a plain-JAX reference of tensor.int().
    ref = jnp.trunc(waveform).astype(jnp.int32)
    assert serialized.dtype == jnp.int32
    assert frames.dtype == jnp.int16
    assert bool(jnp.all(serialized == ref))
    assert bool(jnp.all(frames == ref.astype(jnp.int16)))
    assert bool(success)  # all samples fit in int16 -> module would return True

    # An out-of-int16-range sample: struct.pack('h', ...) would raise -> False.
    bad_wave = waveform.at[7].set(1.0e6)
    _, _, bad_success = tensor_to_wav(bad_wave)
    assert not bool(bad_success)

    print("KERNEL_OK")
</pallas_src>

<mosaic_0001>
module attributes {stable_mosaic.version = 11 : i64} {
  func.func @_tensor_to_wav_kernel(%arg0: i32, %arg1: memref<16x128xf32, #tpu.memory_space<vmem>>, %arg2: memref<16x128xi32, #tpu.memory_space<vmem>>, %arg3: memref<16x128xi16, #tpu.memory_space<vmem>>, %arg4: memref<8x128xi32, #tpu.memory_space<vmem>>) attributes {dimension_semantics = [#tpu.dimension_semantics<parallel>], iteration_bounds = array<i64: 1>, scalar_prefetch = 0 : i64, scratch_operands = 0 : i64, tpu.core_type = #tpu.core_type<tc>, window_params = [{transform_indices = @transform_0, window_bounds = array<i64: 16, 128>}, {transform_indices = @transform_1, window_bounds = array<i64: 16, 128>}, {transform_indices = @transform_2, window_bounds = array<i64: 16, 128>}, {transform_indices = @transform_3, window_bounds = array<i64: 8, 128>}]} {
    %c0 = arith.constant 0 : index
    %c0_0 = arith.constant 0 : index
    %0 = vector.load %arg1[%c0, %c0_0] : memref<16x128xf32, #tpu.memory_space<vmem>>, vector<16x128xf32>
    %1 = arith.fptosi %0 : vector<16x128xf32> to vector<16x128xi32>
    %c0_1 = arith.constant 0 : index
    %c0_2 = arith.constant 0 : index
    %2 = vector.load %arg2[%c0_1, %c0_2] : memref<16x128xi32, #tpu.memory_space<vmem>>, vector<16x128xi32>
    tpu.vector_store %arg2[%c0_1, %c0_2], %1 {strides = array<i32>} : memref<16x128xi32, #tpu.memory_space<vmem>>, vector<16x128xi32>,
    %3 = arith.trunci %1 : vector<16x128xi32> to vector<16x128xi16>
    %c0_3 = arith.constant 0 : index
    %c0_4 = arith.constant 0 : index
    %4 = vector.load %arg3[%c0_3, %c0_4] : memref<16x128xi16, #tpu.memory_space<vmem>>, vector<16x128xi16>
    tpu.vector_store %arg3[%c0_3, %c0_4], %3 {strides = array<i32>} : memref<16x128xi16, #tpu.memory_space<vmem>>, vector<16x128xi16>,
    %c-32768_i32 = arith.constant -32768 : i32
    %5 = vector.broadcast %c-32768_i32 : i32 to vector<16x128xi32>
    %6 = arith.cmpi sge, %1, %5 : vector<16x128xi32>
    %c32767_i32 = arith.constant 32767 : i32
    %7 = vector.broadcast %c32767_i32 : i32 to vector<16x128xi32>
    %8 = arith.cmpi sle, %1, %7 : vector<16x128xi32>
    %9 = arith.andi %6, %8 : vector<16x128xi1>
    %10 = tpu.weird %0 : vector<16x128xf32> -> vector<16x128xi1>
    %cst = arith.constant dense<true> : vector<16x128xi1>
    %11 = arith.xori %10, %cst : vector<16x128xi1>
    %12 = arith.andi %9, %11 : vector<16x128xi1>
    %cst_5 = arith.constant 1.000000e+00 : f32
    %cst_6 = arith.constant 0.000000e+00 : f32
    %13 = vector.broadcast %cst_5 : f32 to vector<16x128xf32>
    %14 = vector.broadcast %cst_6 : f32 to vector<16x128xf32>
    %15 = arith.select %12, %13, %14 : vector<16x128xi1>, vector<16x128xf32>
    %cst_7 = arith.constant dense<0x7F800000> : vector<128xf32>
    %16 = vector.multi_reduction <minimumf>, %15, %cst_7 [0] : vector<16x128xf32> to vector<128xf32>
    %cst_8 = arith.constant 0.000000e+00 : f32
    %17 = vector.broadcast %cst_8 : f32 to vector<128xf32>
    %18 = arith.cmpf ogt, %16, %17 : vector<128xf32>
    %19 = vector.shape_cast %18 : vector<128xi1> to vector<1x128xi1>
    %20 = vector.shape_cast %19 : vector<1x128xi1> to vector<1x128xi1>
    %21 = vector.broadcast %20 : vector<1x128xi1> to vector<8x128xi1>
    %22 = arith.extui %21 : vector<8x128xi1> to vector<8x128xi32>
    %c0_9 = arith.constant 0 : index
    %c0_10 = arith.constant 0 : index
    %23 = vector.load %arg4[%c0_9, %c0_10] : memref<8x128xi32, #tpu.memory_space<vmem>>, vector<8x128xi32>
    tpu.vector_store %arg4[%c0_9, %c0_10], %22 {strides = array<i32>} : memref<8x128xi32, #tpu.memory_space<vmem>>, vector<8x128xi32>,
    return
  }
  func.func @transform_0(%arg0: i32) -> (i32, i32) {
    %c0_i32 = arith.constant 0 : i32
    %c0_i32_0 = arith.constant 0 : i32
    return %arg0, %c0_i32 : i32, i32
  }
  func.func @transform_1(%arg0: i32) -> (i32, i32) {
    %c0_i32 = arith.constant 0 : i32
    %c0_i32_0 = arith.constant 0 : i32
    return %arg0, %c0_i32 : i32, i32
  }
  func.func @transform_2(%arg0: i32) -> (i32, i32) {
    %c0_i32 = arith.constant 0 : i32
    %c0_i32_0 = arith.constant 0 : i32
    return %arg0, %c0_i32 : i32, i32
  }
  func.func @transform_3(%arg0: i32) -> (i32, i32) {
    %c0_i32 = arith.constant 0 : i32
    %c0_i32_0 = arith.constant 0 : i32
    return %arg0, %c0_i32 : i32, i32
  }
}

</mosaic_0001>

<llo_original>
// kernel: tensor_to_wav.1
$region0: #{tensor_to_wav.1}
  #allocation0 [shape = 'u32[]', space=smem, size = 0x4, offset = 0x4, fixed_abs, tag = 'smem constant byte address 0x4 - core index']
  #allocation1 [shape = 'u32[144,128]{1,0:T(1,128)}', space=vmem, size = 0x12000, scoped, tag = 'internal scratch']
  %s0 = inlined_call_operand.hbm [shape: f32[16,128], index: 0, kind: input, shape index: {}]
  %s1 = inlined_call_operand.hbm [shape: s32[16,128], index: 1, kind: output, shape index: {0}]
  %s2 = inlined_call_operand.hbm [shape: s16[16,128], index: 2, kind: output, shape index: {1}]
  %s3 = inlined_call_operand.vmem [shape: s32[8,128], index: 3, kind: output, shape index: {2}]
  %4 = xla_tuple %s1, %s2, %s3
  %s5 = sld [smem:[#allocation0]]
  $region34: #{tensor_to_wav.1} parent=0
    _
  %s7 = ssub.s32 1, %s5
  %s8 = scalar_select 0, %s7, %s5
  $region1: #{tensor_to_wav.1} parent=0
    #allocation2 [shape = 'u8[8192]{0}', space=vmem, size = 0x2000, scoped, tag = 'input window, operand 0, single buffered']
    #allocation3 [shape = 's32[1]{0}', space=sflag, size = 0x4, scoped, tag = 'scoped memory for tensor_to_wav.1']
    #allocation4 [shape = 's32[1]{0}', space=sflag, size = 0x4, scoped, tag = 'scoped memory for tensor_to_wav.1']
    #allocation5 [shape = 'u8[8192]{0}', space=vmem, size = 0x2000, scoped, tag = 'output window, operand 0, single buffered']
    #allocation6 [shape = 'u8[4096]{0}', space=vmem, size = 0x1000, scoped, tag = 'output window, operand 1, single buffered']
    #allocation7 [shape = 's32[1]{0}', space=sflag, size = 0x4, scoped, tag = 'scoped memory for tensor_to_wav.1']
    %9 = vsyncpa [#allocation3], 0
    %10 = vsyncpa [#allocation4], 0
    %11 = vsyncpa [#allocation7], 0
    // Predicated region
    $region2: #{tensor_to_wav.1} parent=1 // pred_check
      _
    $region3: #{tensor_to_wav.1} parent=1 // pred_check_branch
      %13 = sbr.rel (0) target = $region5
    $region4: #{tensor_to_wav.1} parent=1 // pred_region
      %s15 = ssub.s32 256, 256
      %16 = vsyncadd [#allocation3], %s15
      %s17 = sshll.u32 [#allocation2], 4
      %s18 = int_to_ptr.vmem [resolvable:$true] %s17
      %23 = dma.hbm_to_vmem [thread:$0]  %s0, 256, %s18, [#allocation3], 128, 128, 8
    $region5: #{tensor_to_wav.1} parent=1 // pred_fallthru
      _
    // Predicated region
    $region6: #{tensor_to_wav.1} parent=1 // pred_check
      _
    $region7: #{tensor_to_wav.1} parent=1 // pred_check_branch
      %25 = sbr.rel (0) target = $region9
    $region8: #{tensor_to_wav.1} parent=1 // pred_region
      %26 = dma.done [#allocation3], 256
    $region9: #{tensor_to_wav.1} parent=1 // pred_fallthru
      _
    %v27 = vld [vmem:[#allocation2] sm:$0xff]
    %v28 = vld [vmem:[#allocation2 + $0x8] sm:$0xff]
    %v29 = vcvt.f32.s32.to.zero.pseudo %v27
    %v30 = vcvt.f32.s32.to.zero.pseudo %v28
    %31 = vst [vmem:[#allocation5] sm:$0xff] %v29
    %32 = vst [vmem:[#allocation5 + $0x8] sm:$0xff] %v30
    %v33 = vpack.c.b16 %v29, %v29
    %v34 = vpack.c.b16 %v30, %v30
    %35 = vst [vmem:[#allocation6] sm:$0xf] %v33
    %36 = vst [vmem:[#allocation6 + $0x4] sm:$0xf] %v34
    %vm37 = vcmp.ge.s32.totalorder %v29, 4294934528
    %vm38 = vcmp.ge.s32.totalorder %v30, 4294934528
    %vm39 = vcmp.le.s32.totalorder %v29, 32767
    %vm40 = vcmp.le.s32.totalorder %v30, 32767
    %vm41 = vmand %vm37, %vm39
    %vm42 = vmand %vm38, %vm40
    %vm43 = vweird.f32 %v27
    %vm44 = vweird.f32 %v28
    %vm45 = vmxor %vm43, 1
    %vm46 = vmxor %vm44, 1
    %vm47 = vmand %vm41, %vm45
    %vm48 = vmand %vm42, %vm46
    %v49 = vsel %vm47, 1.0, 0.0
    %v50 = vsel %vm48, 1.0, 0.0
    %v51 = vmin.f32 %v49, %v50
    %v52 = vrot.slane %v51, 4
    %v53 = vmin.f32 %v51, %v52
    %v54 = vrot.slane %v53, 2
    %v55 = vmin.f32 %v53, %v54
    %v56 = vrot.slane %v55, 1
    %v57 = vmin.f32 %v55, %v56
    %vm58 = vcmp.gt.f32.partialorder %v57, 0.0
    %v59 = vsel %vm58, 1, 0
    %vm60 = vcmp.eq.s32.totalorder %v59, 1
    %v61 = vsel %vm60, 1, 0
    %vm62 = vcmask 1042434
    %v63 = vsel %vm62, %v61, %v61
    %vm64 = vcmask 1043459
    %v65 = vsel %vm64, %v61, %v63
    %vm66 = vcmask 1044484
    %v67 = vsel %vm66, %v61, %v65
    %vm68 = vcmask 1045509
    %v69 = vsel %vm68, %v61, %v67
    %vm70 = vcmask 1046534
    %v71 = vsel %vm70, %v61, %v69
    %vm72 = vcmask 1047559
    %v73 = vsel %vm72, %v61, %v71
    %74 = vst [vmem:[%s3] sm:$0xff] %v73
    // Predicated region
    $region10: #{tensor_to_wav.1} parent=1 // pred_check
      _
    $region11: #{tensor_to_wav.1} parent=1 // pred_check_branch
      %76 = sbr.rel (0) target = $region13
    $region12: #{tensor_to_wav.1} parent=1 // pred_region
      %s78 = ssub.s32 256, 256
      %79 = vsyncadd [#allocation4], %s78
      %s80 = sshll.u32 [#allocation5], 4
      %s81 = int_to_ptr.vmem [resolvable:$true] %s80
      %86 = dma.vmem_to_hbm [thread:$0]  %s81, 256, %s1, [#allocation4], 128, 128, 8
    $region13: #{tensor_to_wav.1} parent=1 // pred_fallthru
      _
    // Predicated region
    $region14: #{tensor_to_wav.1} parent=1 // pred_check
      _
    $region15: #{tensor_to_wav.1} parent=1 // pred_check_branch
      %88 = sbr.rel (0) target = $region17
    $region16: #{tensor_to_wav.1} parent=1 // pred_region
      %s90 = ssub.s32 128, 128
      %91 = vsyncadd [#allocation7], %s90
      %s92 = sshll.u32 [#allocation6], 4
      %s93 = int_to_ptr.vmem [resolvable:$true] %s92
      %98 = dma.vmem_to_hbm [thread:$0]  %s93, 128, %s2, [#allocation7], 64, 64, 4
    $region17: #{tensor_to_wav.1} parent=1 // pred_fallthru
      _
    // Predicated region
    $region18: #{tensor_to_wav.1} parent=1 // pred_check
      _
    $region19: #{tensor_to_wav.1} parent=1 // pred_check_branch
      %100 = sbr.rel (0) target = $region21
    $region20: #{tensor_to_wav.1} parent=1 // pred_region
      _
    $region21: #{tensor_to_wav.1} parent=1 // pred_fallthru
      _
    // Predicated region
    $region22: #{tensor_to_wav.1} parent=1 // pred_check
      _
    $region23: #{tensor_to_wav.1} parent=1 // pred_check_branch
      %102 = sbr.rel (0) target = $region25
    $region24: #{tensor_to_wav.1} parent=1 // pred_region
      %103 = dma.done [#allocation4], 256
    $region25: #{tensor_to_wav.1} parent=1 // pred_fallthru
      _
    // Predicated region
    $region26: #{tensor_to_wav.1} parent=1 // pred_check
      _
    $region27: #{tensor_to_wav.1} parent=1 // pred_check_branch
      %105 = sbr.rel (0) target = $region29
    $region28: #{tensor_to_wav.1} parent=1 // pred_region
      %106 = dma.done [#allocation7], 128
    $region29: #{tensor_to_wav.1} parent=1 // pred_fallthru
      _
    // Predicated region
    $region30: #{tensor_to_wav.1} parent=1 // pred_check
      _
    $region31: #{tensor_to_wav.1} parent=1 // pred_check_branch
      %108 = sbr.rel (0) target = $region33
    $region32: #{tensor_to_wav.1} parent=1 // pred_region
      _
    $region33: #{tensor_to_wav.1} parent=1 // pred_fallthru
      _
    %109 = vsyncpa [#allocation3], 1
    %110 = vsyncpa [#allocation4], 1
    %111 = vsyncpa [#allocation7], 1

</llo_original>
